<compile_context>
chip_gen: v5e
topology: v5e:2x2
jax: 0.10.0
libtpu: 0.0.40
codegen_flags: <defaults>
</compile_context>

<pallas_src>
import math
import functools

import jax
import jax.numpy as jnp
from jax.experimental import pallas as pl
from jax.experimental.pallas import tpu as pltpu


# ---------------------------------------------------------------------------
# Kernels
# ---------------------------------------------------------------------------
def _gru_kernel_rz_fused(xh_ref, wrz_ref, wxn_ref, whn_ref,
                         brz_ref, bnx_ref, bnh_ref, hy_ref, *, hidden_size):
    """Used when H % 128 == 0.

    xh_ref : (TB, H+I)  with layout [hx | x]
    wrz_ref: (H+I, 2H)  stacked-K, concatenated-N (r | z) weights
    wxn_ref: (I, H)     whn_ref: (H, H)
    b*_ref : (1, 2H) / (1, H) float32
    """
    H = hidden_size
    f32 = jnp.float32
    wd = wrz_ref.dtype

    xh = xh_ref[...]
    h_f32 = xh[:, :H].astype(f32)          # lane-aligned slice (offset 0)
    xh_w = xh.astype(wd)                   # bf16 weights -> bf16 MXU inputs

    # One MXU pass produces both r and z (contraction depth K = H + I).
    gates = jax.nn.sigmoid(
        jnp.dot(xh_w, wrz_ref[...], preferred_element_type=f32) + brz_ref[...])
    r = gates[:, :H]                       # slice at multiple of 128: free
    z = gates[:, H:]

    # n gate: r scales only h_n, so the two projections stay separate.
    i_n = jnp.dot(xh_w[:, H:], wxn_ref[...],
                  preferred_element_type=f32) + bnx_ref[...]
    h_n = jnp.dot(xh_w[:, :H], whn_ref[...],
                  preferred_element_type=f32) + bnh_ref[...]
    n = jnp.tanh(i_n + r * h_n)

    hy_ref[...] = (n + z * (h_f32 - n)).astype(hy_ref.dtype)


def _gru_kernel_rz_split(xh_ref, wr_ref, wz_ref, wxn_ref, whn_ref,
                         br_ref, bz_ref, bnx_ref, bnh_ref, hy_ref, *,
                         hidden_size):
    """Used when H % 128 != 0 (keeps all large slices lane-aligned)."""
    H = hidden_size
    f32 = jnp.float32
    wd = wr_ref.dtype

    xh = xh_ref[...]
    h_f32 = xh[:, :H].astype(f32)
    xh_w = xh.astype(wd)
    h_w = xh_w[:, :H]                      # offset-0 slice of the big tile
    x_w = xh_w[:, H:]                      # small (TB, I) tile

    r = jax.nn.sigmoid(
        jnp.dot(xh_w, wr_ref[...], preferred_element_type=f32) + br_ref[...])
    z = jax.nn.sigmoid(
        jnp.dot(xh_w, wz_ref[...], preferred_element_type=f32) + bz_ref[...])

    i_n = jnp.dot(x_w, wxn_ref[...], preferred_element_type=f32) + bnx_ref[...]
    h_n = jnp.dot(h_w, whn_ref[...], preferred_element_type=f32) + bnh_ref[...]
    n = jnp.tanh(i_n + r * h_n)

    hy_ref[...] = (n + z * (h_f32 - n)).astype(hy_ref.dtype)


# ---------------------------------------------------------------------------
# One-time parameter packing (setup time, not the hot path)
# ---------------------------------------------------------------------------
def prepare_gru_params(weight_ih, weight_hh, bias_ih, bias_hh,
                       *, param_dtype=None):
    """PyTorch layout (3H, I)/(3H, H), gate order r|z|n  ->  packed tensors."""
    H3, I = weight_ih.shape
    H = H3 // 3
    wd = weight_ih.dtype if param_dtype is None else param_dtype
    f32 = jnp.float32

    if bias_ih is None:
        bias_ih = jnp.zeros((3 * H,), f32)
    if bias_hh is None:
        bias_hh = jnp.zeros((3 * H,), f32)

    def gate_t(mat, g):                    # (3H, D) -> (D, H) for gate g
        return mat[g * H:(g + 1) * H, :].T

    # K-stacked (H+I, H) weights, h-rows first to match xh = [hx | x].
    w_r = jnp.concatenate([gate_t(weight_hh, 0), gate_t(weight_ih, 0)],
                          axis=0).astype(wd)
    w_z = jnp.concatenate([gate_t(weight_hh, 1), gate_t(weight_ih, 1)],
                          axis=0).astype(wd)
    wxn = gate_t(weight_ih, 2).astype(wd)          # (I, H)
    whn = gate_t(weight_hh, 2).astype(wd)          # (H, H)

    # r/z biases pre-combined; n-gate biases kept separate (PyTorch exact).
    b_r = (bias_ih[0:H] + bias_hh[0:H]).astype(f32).reshape(1, H)
    b_z = (bias_ih[H:2 * H] + bias_hh[H:2 * H]).astype(f32).reshape(1, H)
    bnx = bias_ih[2 * H:3 * H].astype(f32).reshape(1, H)
    bnh = bias_hh[2 * H:3 * H].astype(f32).reshape(1, H)

    rz_fused = (H % 128 == 0)
    if rz_fused:
        w_rz = jnp.concatenate([w_r, w_z], axis=1)   # (H+I, 2H)
        b_rz = jnp.concatenate([b_r, b_z], axis=1)   # (1, 2H)
        tensors = (w_rz, wxn, whn, b_rz, bnx, bnh)
    else:
        tensors = (w_r, w_z, wxn, whn, b_r, b_z, bnx, bnh)

    return {"hidden_size": H, "input_size": I,
            "rz_fused": rz_fused, "tensors": tensors}


# ---------------------------------------------------------------------------
# Forward wrappers
# ---------------------------------------------------------------------------
def _vmem_capacity_bytes():
    try:
        return int(pltpu.get_tpu_info().vmem_capacity_bytes)
    except Exception:
        return 64 * 1024 * 1024            # conservative fallback


def gru_cell_forward_packed(x, hx, params, *, block_b=256):
    """GRU cell forward with pre-packed params (see prepare_gru_params)."""
    B, I = x.shape
    H = params["hidden_size"]
    rz_fused = params["rz_fused"]
    tensors = params["tensors"]
    K = H + I

    # Fused activation tile: contraction axis for the r/z matmuls is H + I.
    xh = jnp.concatenate([hx, x], axis=-1)           # (B, H+I)

    # Batch tile: whole batch if small, else a multiple-of-8 row tile.
    tb = B if B <= block_b else max(8, (block_b // 8) * 8)
    grid = (pl.cdiv(B, tb),)

    xh_spec = pl.BlockSpec((tb, K), lambda i: (i, 0))
    out_spec = pl.BlockSpec((tb, H), lambda i: (i, 0))

    def const_spec(shape):
        # Constant block index -> stays VMEM-resident across batch tiles;
        # Buffered(1) avoids paying for a useless second buffer.
        return pl.BlockSpec(shape, lambda i: (0, 0),
                            pipeline_mode=pl.Buffered(1))

    in_specs = [xh_spec] + [const_spec(t.shape) for t in tensors]

    kernel = functools.partial(
        _gru_kernel_rz_fused if rz_fused else _gru_kernel_rz_split,
        hidden_size=H)

    # VMEM budget: single-buffered weights/biases + double-buffered act tiles.
    w_bytes = sum(int(t.size) * t.dtype.itemsize for t in tensors)
    act_bytes = 2 * tb * (K * xh.dtype.itemsize + H * x.dtype.itemsize)
    needed = w_bytes + act_bytes
    ceiling = int(0.85 * _vmem_capacity_bytes())     # ~108 MiB v5e/v6e, ~54 MiB v7x
    vmem_limit = int(min(ceiling, max(32 * 1024 * 1024, int(1.5 * needed))))

    return pl.pallas_call(
        kernel,
        out_shape=jax.ShapeDtypeStruct((B, H), x.dtype),
        grid=grid,
        in_specs=in_specs,
        out_specs=out_spec,
        compiler_params=pltpu.CompilerParams(
            dimension_semantics=("parallel",),
            vmem_limit_bytes=vmem_limit,
        ),
    )(xh, *tensors)


def gru_cell_forward(x, hx, weight_ih, weight_hh, bias_ih, bias_hh,
                     *, param_dtype=None, block_b=256):
    """Convenience wrapper: PyTorch-layout params -> pack -> Pallas kernel."""
    params = prepare_gru_params(weight_ih, weight_hh, bias_ih, bias_hh,
                                param_dtype=param_dtype)
    return gru_cell_forward_packed(x, hx, params, block_b=block_b)


def gru_cell_reference(x, hx, weight_ih, weight_hh, bias_ih, bias_hh):
    """Pure-JAX reference mirroring the PyTorch forward exactly."""
    gi = x @ weight_ih.T + bias_ih
    gh = hx @ weight_hh.T + bias_hh
    H = hx.shape[1]
    i_r, i_i, i_n = gi[:, :H], gi[:, H:2 * H], gi[:, 2 * H:]
    h_r, h_i, h_n = gh[:, :H], gh[:, H:2 * H], gh[:, 2 * H:]
    r = jax.nn.sigmoid(i_r + h_r)
    z = jax.nn.sigmoid(i_i + h_i)
    n = jnp.tanh(i_n + r * h_n)
    return n + z * (hx - n)


# ---------------------------------------------------------------------------
# Self-test
# ---------------------------------------------------------------------------
if __name__ == "__main__":
    dtype = jnp.float32
    key = jax.random.PRNGKey(0)
    keys = jax.random.split(key, 12)

    def make_params(kw, kh, kbi, kbh, I, H):
        stdv = 1.0 / math.sqrt(H)
        w_ih = jax.random.uniform(kw, (3 * H, I), dtype, -stdv, stdv)
        w_hh = jax.random.uniform(kh, (3 * H, H), dtype, -stdv, stdv)
        b_ih = jax.random.uniform(kbi, (3 * H,), dtype, -stdv, stdv)
        b_hh = jax.random.uniform(kbh, (3 * H,), dtype, -stdv, stdv)
        return w_ih, w_hh, b_ih, b_hh

    # --- 1) Small module shapes: B=2, I=4, H=32 (split-rz kernel path) -----
    B, I, H = 2, 4, 32
    w_ih, w_hh, b_ih, b_hh = make_params(keys[0], keys[1], keys[2], keys[3], I, H)
    x = jax.random.normal(keys[4], (B, I), dtype)
    hx = jax.random.normal(keys[5], (B, H), dtype)

    hy = jax.block_until_ready(gru_cell_forward(x, hx, w_ih, w_hh, b_ih, b_hh))
    hy_ref = gru_cell_reference(x, hx, w_ih, w_hh, b_ih, b_hh)
    assert hy.shape == (B, H)
    assert jnp.allclose(hy, hy_ref, atol=1e-5, rtol=1e-5), "f32 mismatch"

    # --- 2) bf16 weights (f32 accumulation) ---------------------------------
    hy_bf16 = jax.block_until_ready(
        gru_cell_forward(x, hx, w_ih, w_hh, b_ih, b_hh,
                         param_dtype=jnp.bfloat16))
    assert jnp.allclose(hy_bf16, hy_ref, atol=5e-2, rtol=5e-2), "bf16 mismatch"

    # --- 3) Multi-tile batch grid (exercises pipelining): B=32, TB=8 --------
    B2 = 32
    x2 = jax.random.normal(keys[6], (B2, I), dtype)
    hx2 = jax.random.normal(keys[7], (B2, H), dtype)
    hy2 = jax.block_until_ready(
        gru_cell_forward(x2, hx2, w_ih, w_hh, b_ih, b_hh, block_b=8))
    hy2_ref = gru_cell_reference(x2, hx2, w_ih, w_hh, b_ih, b_hh)
    assert jnp.allclose(hy2, hy2_ref, atol=1e-5, rtol=1e-5), "tiled mismatch"

    # --- 4) H multiple of 128 -> fused r/z matmul path ----------------------
    H3 = 128
    w_ih3, w_hh3, b_ih3, b_hh3 = make_params(keys[8], keys[9], keys[10],
                                             keys[11], I, H3)
    x3 = jax.random.normal(keys[4], (B, I), dtype)
    hx3 = jax.random.normal(keys[5], (B, H3), dtype)
    hy3 = jax.block_until_ready(
        gru_cell_forward(x3, hx3, w_ih3, w_hh3, b_ih3, b_hh3))
    hy3_ref = gru_cell_reference(x3, hx3, w_ih3, w_hh3, b_ih3, b_hh3)
    assert jnp.allclose(hy3, hy3_ref, atol=1e-5, rtol=1e-5), "rz-fused mismatch"

    print("KERNEL_OK")
</pallas_src>

<mosaic_0001>
module attributes {stable_mosaic.version = 11 : i64} {
  func.func @_gru_kernel_rz_split(%arg0: i32, %arg1: memref<2x36xf32, #tpu.memory_space<vmem>>, %arg2: memref<36x32xf32, #tpu.memory_space<vmem>>, %arg3: memref<36x32xf32, #tpu.memory_space<vmem>>, %arg4: memref<4x32xf32, #tpu.memory_space<vmem>>, %arg5: memref<32x32xf32, #tpu.memory_space<vmem>>, %arg6: memref<1x32xf32, #tpu.memory_space<vmem>>, %arg7: memref<1x32xf32, #tpu.memory_space<vmem>>, %arg8: memref<1x32xf32, #tpu.memory_space<vmem>>, %arg9: memref<1x32xf32, #tpu.memory_space<vmem>>, %arg10: memref<2x32xf32, #tpu.memory_space<vmem>>) attributes {dimension_semantics = [#tpu.dimension_semantics<parallel>], iteration_bounds = array<i64: 1>, scalar_prefetch = 0 : i64, scratch_operands = 0 : i64, tpu.core_type = #tpu.core_type<tc>, window_params = [{transform_indices = @transform_0, window_bounds = array<i64: 2, 36>}, {pipeline_mode = #tpu.pipeline_mode<synchronous>, transform_indices = @transform_1, window_bounds = array<i64: 36, 32>}, {pipeline_mode = #tpu.pipeline_mode<synchronous>, transform_indices = @transform_2, window_bounds = array<i64: 36, 32>}, {pipeline_mode = #tpu.pipeline_mode<synchronous>, transform_indices = @transform_3, window_bounds = array<i64: 4, 32>}, {pipeline_mode = #tpu.pipeline_mode<synchronous>, transform_indices = @transform_4, window_bounds = array<i64: 32, 32>}, {pipeline_mode = #tpu.pipeline_mode<synchronous>, transform_indices = @transform_5, window_bounds = array<i64: 1, 32>}, {pipeline_mode = #tpu.pipeline_mode<synchronous>, transform_indices = @transform_6, window_bounds = array<i64: 1, 32>}, {pipeline_mode = #tpu.pipeline_mode<synchronous>, transform_indices = @transform_7, window_bounds = array<i64: 1, 32>}, {pipeline_mode = #tpu.pipeline_mode<synchronous>, transform_indices = @transform_8, window_bounds = array<i64: 1, 32>}, {transform_indices = @transform_9, window_bounds = array<i64: 2, 32>}]} {
    %c0 = arith.constant 0 : index
    %c0_0 = arith.constant 0 : index
    %0 = vector.load %arg1[%c0, %c0_0] : memref<2x36xf32, #tpu.memory_space<vmem>>, vector<2x36xf32>
    %1 = vector.extract_strided_slice %0 {offsets = [0, 0], sizes = [2, 32], strides = [1, 1]} : vector<2x36xf32> to vector<2x32xf32>
    %2 = vector.extract_strided_slice %0 {offsets = [0, 0], sizes = [2, 32], strides = [1, 1]} : vector<2x36xf32> to vector<2x32xf32>
    %3 = vector.extract_strided_slice %0 {offsets = [0, 32], sizes = [2, 4], strides = [1, 1]} : vector<2x36xf32> to vector<2x4xf32>
    %c0_1 = arith.constant 0 : index
    %c0_2 = arith.constant 0 : index
    %4 = vector.load %arg2[%c0_1, %c0_2] : memref<36x32xf32, #tpu.memory_space<vmem>>, vector<36x32xf32>
    %cst = arith.constant dense<0.000000e+00> : vector<2x32xf32>
    %5 = tpu.matmul %0, %4, %cst {dimension_numbers = #tpu.dot_dimension_numbers<[1], [0], [0], [1], [0, 0, 1, 1], [], []>} : vector<2x36xf32>, vector<36x32xf32>, vector<2x32xf32> -> vector<2x32xf32>
    %c0_3 = arith.constant 0 : index
    %c0_4 = arith.constant 0 : index
    %6 = vector.load %arg6[%c0_3, %c0_4] : memref<1x32xf32, #tpu.memory_space<vmem>>, vector<1x32xf32>
    %7 = vector.broadcast %6 : vector<1x32xf32> to vector<2x32xf32>
    %8 = arith.addf %5, %7 : vector<2x32xf32>
    %9 = arith.negf %8 : vector<2x32xf32>
    %10 = math.exp %9 : vector<2x32xf32>
    %cst_5 = arith.constant 1.000000e+00 : f32
    %11 = vector.broadcast %cst_5 : f32 to vector<2x32xf32>
    %12 = arith.addf %11, %10 : vector<2x32xf32>
    %13 = arith.divf %11, %12 : vector<2x32xf32>
    %c0_6 = arith.constant 0 : index
    %c0_7 = arith.constant 0 : index
    %14 = vector.load %arg3[%c0_6, %c0_7] : memref<36x32xf32, #tpu.memory_space<vmem>>, vector<36x32xf32>
    %cst_8 = arith.constant dense<0.000000e+00> : vector<2x32xf32>
    %15 = tpu.matmul %0, %14, %cst_8 {dimension_numbers = #tpu.dot_dimension_numbers<[1], [0], [0], [1], [0, 0, 1, 1], [], []>} : vector<2x36xf32>, vector<36x32xf32>, vector<2x32xf32> -> vector<2x32xf32>
    %c0_9 = arith.constant 0 : index
    %c0_10 = arith.constant 0 : index
    %16 = vector.load %arg7[%c0_9, %c0_10] : memref<1x32xf32, #tpu.memory_space<vmem>>, vector<1x32xf32>
    %17 = vector.broadcast %16 : vector<1x32xf32> to vector<2x32xf32>
    %18 = arith.addf %15, %17 : vector<2x32xf32>
    %19 = arith.negf %18 : vector<2x32xf32>
    %20 = math.exp %19 : vector<2x32xf32>
    %cst_11 = arith.constant 1.000000e+00 : f32
    %21 = vector.broadcast %cst_11 : f32 to vector<2x32xf32>
    %22 = arith.addf %21, %20 : vector<2x32xf32>
    %23 = arith.divf %21, %22 : vector<2x32xf32>
    %c0_12 = arith.constant 0 : index
    %c0_13 = arith.constant 0 : index
    %24 = vector.load %arg4[%c0_12, %c0_13] : memref<4x32xf32, #tpu.memory_space<vmem>>, vector<4x32xf32>
    %cst_14 = arith.constant dense<0.000000e+00> : vector<2x32xf32>
    %25 = tpu.matmul %3, %24, %cst_14 {dimension_numbers = #tpu.dot_dimension_numbers<[1], [0], [0], [1], [0, 0, 1, 1], [], []>} : vector<2x4xf32>, vector<4x32xf32>, vector<2x32xf32> -> vector<2x32xf32>
    %c0_15 = arith.constant 0 : index
    %c0_16 = arith.constant 0 : index
    %26 = vector.load %arg8[%c0_15, %c0_16] : memref<1x32xf32, #tpu.memory_space<vmem>>, vector<1x32xf32>
    %27 = vector.broadcast %26 : vector<1x32xf32> to vector<2x32xf32>
    %28 = arith.addf %25, %27 : vector<2x32xf32>
    %c0_17 = arith.constant 0 : index
    %c0_18 = arith.constant 0 : index
    %29 = vector.load %arg5[%c0_17, %c0_18] : memref<32x32xf32, #tpu.memory_space<vmem>>, vector<32x32xf32>
    %cst_19 = arith.constant dense<0.000000e+00> : vector<2x32xf32>
    %30 = tpu.matmul %2, %29, %cst_19 {dimension_numbers = #tpu.dot_dimension_numbers<[1], [0], [0], [1], [0, 0, 1, 1], [], []>} : vector<2x32xf32>, vector<32x32xf32>, vector<2x32xf32> -> vector<2x32xf32>
    %c0_20 = arith.constant 0 : index
    %c0_21 = arith.constant 0 : index
    %31 = vector.load %arg9[%c0_20, %c0_21] : memref<1x32xf32, #tpu.memory_space<vmem>>, vector<1x32xf32>
    %32 = vector.broadcast %31 : vector<1x32xf32> to vector<2x32xf32>
    %33 = arith.addf %30, %32 : vector<2x32xf32>
    %34 = arith.mulf %13, %33 : vector<2x32xf32>
    %35 = arith.addf %28, %34 : vector<2x32xf32>
    %36 = math.tanh %35 : vector<2x32xf32>
    %37 = arith.subf %1, %36 : vector<2x32xf32>
    %38 = arith.mulf %23, %37 : vector<2x32xf32>
    %39 = arith.addf %36, %38 : vector<2x32xf32>
    %c0_22 = arith.constant 0 : index
    %c0_23 = arith.constant 0 : index
    %40 = vector.load %arg10[%c0_22, %c0_23] : memref<2x32xf32, #tpu.memory_space<vmem>>, vector<2x32xf32>
    tpu.vector_store %arg10[%c0_22, %c0_23], %39 {strides = array<i32>} : memref<2x32xf32, #tpu.memory_space<vmem>>, vector<2x32xf32>,
    return
  }
  func.func @transform_0(%arg0: i32) -> (i32, i32) {
    %c0_i32 = arith.constant 0 : i32
    %c0_i32_0 = arith.constant 0 : i32
    return %arg0, %c0_i32 : i32, i32
  }
  func.func @transform_1(%arg0: i32) -> (i32, i32) {
    %c0_i32 = arith.constant 0 : i32
    %c0_i32_0 = arith.constant 0 : i32
    %c0_i32_1 = arith.constant 0 : i32
    return %c0_i32, %c0_i32_0 : i32, i32
  }
  func.func @transform_2(%arg0: i32) -> (i32, i32) {
    %c0_i32 = arith.constant 0 : i32
    %c0_i32_0 = arith.constant 0 : i32
    %c0_i32_1 = arith.constant 0 : i32
    return %c0_i32, %c0_i32_0 : i32, i32
  }
  func.func @transform_3(%arg0: i32) -> (i32, i32) {
    %c0_i32 = arith.constant 0 : i32
    %c0_i32_0 = arith.constant 0 : i32
    %c0_i32_1 = arith.constant 0 : i32
    return %c0_i32, %c0_i32_0 : i32, i32
  }
  func.func @transform_4(%arg0: i32) -> (i32, i32) {
    %c0_i32 = arith.constant 0 : i32
    %c0_i32_0 = arith.constant 0 : i32
    %c0_i32_1 = arith.constant 0 : i32
    return %c0_i32, %c0_i32_0 : i32, i32
  }
  func.func @transform_5(%arg0: i32) -> (i32, i32) {
    %c0_i32 = arith.constant 0 : i32
    %c0_i32_0 = arith.constant 0 : i32
    %c0_i32_1 = arith.constant 0 : i32
    return %c0_i32, %c0_i32_0 : i32, i32
  }
  func.func @transform_6(%arg0: i32) -> (i32, i32) {
    %c0_i32 = arith.constant 0 : i32
    %c0_i32_0 = arith.constant 0 : i32
    %c0_i32_1 = arith.constant 0 : i32
    return %c0_i32, %c0_i32_0 : i32, i32
  }
  func.func @transform_7(%arg0: i32) -> (i32, i32) {
    %c0_i32 = arith.constant 0 : i32
    %c0_i32_0 = arith.constant 0 : i32
    %c0_i32_1 = arith.constant 0 : i32
    return %c0_i32, %c0_i32_0 : i32, i32
  }
  func.func @transform_8(%arg0: i32) -> (i32, i32) {
    %c0_i32 = arith.constant 0 : i32
    %c0_i32_0 = arith.constant 0 : i32
    %c0_i32_1 = arith.constant 0 : i32
    return %c0_i32, %c0_i32_0 : i32, i32
  }
  func.func @transform_9(%arg0: i32) -> (i32, i32) {
    %c0_i32 = arith.constant 0 : i32
    %c0_i32_0 = arith.constant 0 : i32
    return %arg0, %c0_i32 : i32, i32
  }
}

</mosaic_0001>

<llo_original>
// kernel: tpu_custom_call.1
$region0: #{tpu_custom_call.1}
  #allocation0 [shape = 'u32[]', space=smem, size = 0x4, offset = 0x4, fixed_abs, tag = 'smem constant byte address 0x4 - core index']
  #allocation1 [shape = 'u32[72,128]{1,0:T(1,128)}', space=vmem, size = 0x9000, scoped, tag = 'internal scratch']
  %s0 = inlined_call_operand.vmem [shape: f32[2,36], index: 0, kind: input, shape index: {}]
  %s1 = inlined_call_operand.vmem [shape: f32[36,32], index: 1, kind: input, shape index: {}]
  %s2 = inlined_call_operand.vmem [shape: f32[36,32], index: 2, kind: input, shape index: {}]
  %s3 = inlined_call_operand.vmem [shape: f32[4,32], index: 3, kind: input, shape index: {}]
  %s4 = inlined_call_operand.vmem [shape: f32[32,32], index: 4, kind: input, shape index: {}]
  %s5 = inlined_call_operand.vmem [shape: f32[1,32], index: 5, kind: input, shape index: {}]
  %s6 = inlined_call_operand.vmem [shape: f32[1,32], index: 6, kind: input, shape index: {}]
  %s7 = inlined_call_operand.vmem [shape: f32[1,32], index: 7, kind: input, shape index: {}]
  %s8 = inlined_call_operand.vmem [shape: f32[1,32], index: 8, kind: input, shape index: {}]
  %s9 = inlined_call_operand.hbm [shape: f32[2,32], index: 9, kind: output, shape index: {}]
  %s10 = sld [smem:[#allocation0]]
  $region46: #{tpu_custom_call.1} parent=0
    _
  %s12 = ssub.s32 1, %s10
  %s13 = scalar_select 0, %s12, %s10
  $region1: #{tpu_custom_call.1} parent=0
    #allocation2 [shape = 'u8[1024]{0}', space=vmem, size = 0x400, scoped, tag = 'output window, operand 0, single buffered']
    #allocation3 [shape = 's32[1]{0}', space=sflag, size = 0x4, scoped, tag = 'scoped memory for tpu_custom_call.1']
    %14 = vsyncpa [#allocation3], 0
    // Predicated region
    $region2: #{tpu_custom_call.1} parent=1 // pred_check
      _
    $region3: #{tpu_custom_call.1} parent=1 // pred_check_branch
      %16 = sbr.rel (0) target = $region5
    $region4: #{tpu_custom_call.1} parent=1 // pred_region
      _
    $region5: #{tpu_custom_call.1} parent=1 // pred_fallthru
      _
    // Predicated region
    $region6: #{tpu_custom_call.1} parent=1 // pred_check
      _
    $region7: #{tpu_custom_call.1} parent=1 // pred_check_branch
      %18 = sbr.rel (0) target = $region9
    $region8: #{tpu_custom_call.1} parent=1 // pred_region
      _
    $region9: #{tpu_custom_call.1} parent=1 // pred_fallthru
      _
    // Predicated region
    $region10: #{tpu_custom_call.1} parent=1 // pred_check
      _
    $region11: #{tpu_custom_call.1} parent=1 // pred_check_branch
      %20 = sbr.rel (0) target = $region13
    $region12: #{tpu_custom_call.1} parent=1 // pred_region
      _
    $region13: #{tpu_custom_call.1} parent=1 // pred_fallthru
      _
    // Predicated region
    $region14: #{tpu_custom_call.1} parent=1 // pred_check
      _
    $region15: #{tpu_custom_call.1} parent=1 // pred_check_branch
      %22 = sbr.rel (0) target = $region17
    $region16: #{tpu_custom_call.1} parent=1 // pred_region
      _
    $region17: #{tpu_custom_call.1} parent=1 // pred_fallthru
      _
    // Predicated region
    $region18: #{tpu_custom_call.1} parent=1 // pred_check
      _
    $region19: #{tpu_custom_call.1} parent=1 // pred_check_branch
      %24 = sbr.rel (0) target = $region21
    $region20: #{tpu_custom_call.1} parent=1 // pred_region
      _
    $region21: #{tpu_custom_call.1} parent=1 // pred_fallthru
      _
    // Predicated region
    $region22: #{tpu_custom_call.1} parent=1 // pred_check
      _
    $region23: #{tpu_custom_call.1} parent=1 // pred_check_branch
      %26 = sbr.rel (0) target = $region25
    $region24: #{tpu_custom_call.1} parent=1 // pred_region
      _
    $region25: #{tpu_custom_call.1} parent=1 // pred_fallthru
      _
    // Predicated region
    $region26: #{tpu_custom_call.1} parent=1 // pred_check
      _
    $region27: #{tpu_custom_call.1} parent=1 // pred_check_branch
      %28 = sbr.rel (0) target = $region29
    $region28: #{tpu_custom_call.1} parent=1 // pred_region
      _
    $region29: #{tpu_custom_call.1} parent=1 // pred_fallthru
      _
    // Predicated region
    $region30: #{tpu_custom_call.1} parent=1 // pred_check
      _
    $region31: #{tpu_custom_call.1} parent=1 // pred_check_branch
      %30 = sbr.rel (0) target = $region33
    $region32: #{tpu_custom_call.1} parent=1 // pred_region
      _
    $region33: #{tpu_custom_call.1} parent=1 // pred_fallthru
      _
    // Predicated region
    $region34: #{tpu_custom_call.1} parent=1 // pred_check
      _
    $region35: #{tpu_custom_call.1} parent=1 // pred_check_branch
      %32 = sbr.rel (0) target = $region37
    $region36: #{tpu_custom_call.1} parent=1 // pred_region
      _
    $region37: #{tpu_custom_call.1} parent=1 // pred_fallthru
      _
    %v33 = vld [vmem:[%s0] sm:$0x3]
    %v34 = vld [vmem:[%s1] sm:$0xff]
    %v35 = vld [vmem:[%s1 + $0x8] sm:$0xff]
    %v36 = vld [vmem:[%s1 + $0x10] sm:$0xff]
    %v37 = vld [vmem:[%s1 + $0x18] sm:$0xff]
    %v38 = vld [vmem:[%s1 + $0x20] sm:$0xf]
    %v39 = vld [vmem:[%s5] sm:$0x1]
    %v41 = vperm.slane %v39, 0
    %vm43 = vcmask 293888
    %v45 = vsel %vm43, %v33, 0
    %vm47 = vcmask 1043456
    %v49 = vsel %vm47, %v38, 0
    %51 = vmatpush.msra.mxu0 0.0
    %52 = vmatpush.msra.mxu0 0.0
    %53 = vmatpush.msra.mxu0 0.0
    %54 = vmatpush.msra.mxu0 0.0
    %55 = vmatpush.msra.mxu0 0.0
    %56 = vmatpush.msra.mxu0 0.0
    %57 = vmatpush.msra.mxu0 0.0
    %58 = vmatpush.msra.mxu0 0.0
    %59 = vmatpush.msra.mxu0 0.0
    %60 = vmatpush.msra.mxu0 0.0
    %61 = vmatpush.msra.mxu0 0.0
    %62 = vmatpush.msra.mxu0 %v49
    %63 = vmatpush.msra.mxu0 %v37
    %64 = vmatpush.msra.mxu0 %v36
    %65 = vmatpush.msra.mxu0 %v35
    %66 = vmatpush.msra.mxu0 %v34
    %67 = vmatmul.f32.gmra.mxu0 %v45
    %v68 = vpop.f32.mrf.mxu0
    %v69 = vadd.f32 %v41, %v68
    %70 = vdwg.mxu0
    %v71 = vxor.u32 %v69, 2147483648
    %v72 = vmul.f32 %v71, 1.442695
    %v73 = vpow.pop %v72
    %v74 = vadd.f32 %v73, 1.0
    %v75 = vrcp.pop %v74
    %v76 = vmul.f32 %v74, %v75
    %v77 = vsub.f32 1.0, %v76
    %v78 = vmul.f32 %v75, %v77
    %v79 = vadd.f32 %v75, %v78
    %vm80 = vweird.f32 %v74
    %vm81 = vweird.f32 %v75
    %vm82 = vmor %vm80, %vm81
    %v83 = vsel %vm82, %v75, %v79
    %v84 = vand.u32 2147483647, %v74
    %vm85 = vcmp.eq.f32.partialorder %v84, 8.507059e+37
    %v86 = vand.u32 %v74, 2147483648
    %v87 = vor.u32 1.1754944e-38, %v86
    %v88 = vsel %vm85, %v87, %v83
    %v89 = vmul.f32 1.0, %v88
    %v90 = vld [vmem:[%s2] sm:$0xff]
    %v91 = vld [vmem:[%s2 + $0x8] sm:$0xff]
    %v92 = vld [vmem:[%s2 + $0x10] sm:$0xff]
    %v93 = vld [vmem:[%s2 + $0x18] sm:$0xff]
    %v94 = vld [vmem:[%s2 + $0x20] sm:$0xf]
    %v95 = vld [vmem:[%s6] sm:$0x1]
    %v97 = vperm.slane %v95, 0
    %v100 = vsel %vm47, %v94, 0
    %102 = vmatpush.msra.mxu0 0.0
    %103 = vmatpush.msra.mxu0 0.0
    %104 = vmatpush.msra.mxu0 0.0
    %105 = vmatpush.msra.mxu0 0.0
    %106 = vmatpush.msra.mxu0 0.0
    %107 = vmatpush.msra.mxu0 0.0
    %108 = vmatpush.msra.mxu0 0.0
    %109 = vmatpush.msra.mxu0 0.0
    %110 = vmatpush.msra.mxu0 0.0
    %111 = vmatpush.msra.mxu0 0.0
    %112 = vmatpush.msra.mxu0 0.0
    %113 = vmatpush.msra.mxu0 %v100
    %114 = vmatpush.msra.mxu0 %v93
    %115 = vmatpush.msra.mxu0 %v92
    %116 = vmatpush.msra.mxu0 %v91
    %117 = vmatpush.msra.mxu0 %v90
    %118 = vmatmul.f32.gmra.mxu0 %v45
    %v119 = vpop.f32.mrf.mxu0
    %v120 = vadd.f32 %v97, %v119
    %121 = vdwg.mxu0
    %v122 = vxor.u32 %v120, 2147483648
    %v123 = vmul.f32 %v122, 1.442695
    %v124 = vpow.pop %v123
    %v125 = vadd.f32 %v124, 1.0
    %v126 = vrcp.pop %v125
    %v127 = vmul.f32 %v125, %v126
    %v128 = vsub.f32 1.0, %v127
    %v129 = vmul.f32 %v126, %v128
    %v130 = vadd.f32 %v126, %v129
    %vm131 = vweird.f32 %v125
    %vm132 = vweird.f32 %v126
    %vm133 = vmor %vm131, %vm132
    %v134 = vsel %vm133, %v126, %v130
    %v135 = vand.u32 2147483647, %v125
    %vm136 = vcmp.eq.f32.partialorder %v135, 8.507059e+37
    %v137 = vand.u32 %v125, 2147483648
    %v138 = vor.u32 1.1754944e-38, %v137
    %v139 = vsel %vm136, %v138, %v134
    %v140 = vmul.f32 1.0, %v139
    %v141 = vld [vmem:[%s3] sm:$0xf]
    %v142 = vld [vmem:[%s7] sm:$0x1]
    %v144 = vperm.slane %v142, 0
    %146 = vrot.lane.b32.xlu0 %v33, 96
    %v147 = vpop.permute.xlu0 %146
    %vm148 = vcmask 31744
    %v149 = vsel %vm148, %v147, 0
    %v152 = vsel %vm47, %v141, 0
    %154 = vmatpush.msra.mxu0 0.0
    %155 = vmatpush.msra.mxu0 0.0
    %156 = vmatpush.msra.mxu0 0.0
    %157 = vmatpush.msra.mxu0 0.0
    %158 = vmatpush.msra.mxu0 0.0
    %159 = vmatpush.msra.mxu0 0.0
    %160 = vmatpush.msra.mxu0 0.0
    %161 = vmatpush.msra.mxu0 0.0
    %162 = vmatpush.msra.mxu0 0.0
    %163 = vmatpush.msra.mxu0 0.0
    %164 = vmatpush.msra.mxu0 0.0
    %165 = vmatpush.msra.mxu0 0.0
    %166 = vmatpush.msra.mxu0 0.0
    %167 = vmatpush.msra.mxu0 0.0
    %168 = vmatpush.msra.mxu0 0.0
    %169 = vmatpush.msra.mxu0 %v152
    %170 = vmatmul.f32.gmra.mxu0 %v149
    %v171 = vpop.f32.mrf.mxu0
    %v172 = vadd.f32 %v144, %v171
    %173 = vdwg.mxu0
    %v174 = vld [vmem:[%s4] sm:$0xff]
    %v175 = vld [vmem:[%s4 + $0x8] sm:$0xff]
    %v176 = vld [vmem:[%s4 + $0x10] sm:$0xff]
    %v177 = vld [vmem:[%s4 + $0x18] sm:$0xff]
    %v178 = vld [vmem:[%s8] sm:$0x1]
    %v180 = vperm.slane %v178, 0
    %vm182 = vcmask 261120
    %v183 = vsel %vm182, %v33, 0
    %185 = vmatpush.msra.mxu0 0.0
    %186 = vmatpush.msra.mxu0 0.0
    %187 = vmatpush.msra.mxu0 0.0
    %188 = vmatpush.msra.mxu0 0.0
    %189 = vmatpush.msra.mxu0 0.0
    %190 = vmatpush.msra.mxu0 0.0
    %191 = vmatpush.msra.mxu0 0.0
    %192 = vmatpush.msra.mxu0 0.0
    %193 = vmatpush.msra.mxu0 0.0
    %194 = vmatpush.msra.mxu0 0.0
    %195 = vmatpush.msra.mxu0 0.0
    %196 = vmatpush.msra.mxu0 0.0
    %197 = vmatpush.msra.mxu0 %v177
    %198 = vmatpush.msra.mxu0 %v176
    %199 = vmatpush.msra.mxu0 %v175
    %200 = vmatpush.msra.mxu0 %v174
    %201 = vmatmul.f32.gmra.mxu0 %v183
    %v202 = vpop.f32.mrf.mxu0
    %v203 = vadd.f32 %v180, %v202
    %204 = vdwg.mxu0
    %v205 = vmul.f32 %v89, %v203
    %v206 = vadd.f32 %v172, %v205
    %v207 = vtanh.pop %v206
    %v208 = vsub.f32 %v33, %v207
    %v209 = vmul.f32 %v140, %v208
    %v210 = vadd.f32 %v207, %v209
    %vm211 = vcmask 254976
    %212 = vst.msk [vmem:[#allocation2] sm:$0x3] %vm211, %v210
    // Predicated region
    $region38: #{tpu_custom_call.1} parent=1 // pred_check
      _
    $region39: #{tpu_custom_call.1} parent=1 // pred_check_branch
      %214 = sbr.rel (0) target = $region41
    $region40: #{tpu_custom_call.1} parent=1 // pred_region
      %216 = vsyncadd [#allocation3], 0
      %s218 = sshll.u32 [#allocation2], 4
      %s219 = int_to_ptr.vmem [resolvable:$true] %s218
      %s220 = sshll.u32 %s9, 4
      %s221 = int_to_ptr.hbm [resolvable:$true] %s220
      %223 = dma.vmem_to_hbm [thread:$0]  %s219, 32, %s221, [#allocation3]
    $region41: #{tpu_custom_call.1} parent=1 // pred_fallthru
      _
    // Predicated region
    $region42: #{tpu_custom_call.1} parent=1 // pred_check
      _
    $region43: #{tpu_custom_call.1} parent=1 // pred_check_branch
      %225 = sbr.rel (0) target = $region45
    $region44: #{tpu_custom_call.1} parent=1 // pred_region
      %227 = dma.done [#allocation3], 32
    $region45: #{tpu_custom_call.1} parent=1 // pred_fallthru
      _
    %228 = vsyncpa [#allocation3], 1

</llo_original>
